<compile_context>
chip_gen: v5e
topology: v5e:2x2
jax: 0.10.0
libtpu: 0.0.40
codegen_flags: <defaults>
</compile_context>

<pallas_src>
import functools

import jax
import jax.numpy as jnp
from jax.experimental import pallas as pl
from jax.experimental.pallas import tpu as pltpu

_MIB = 1024 * 1024

_ACTS = {
    None: lambda v: v,
    "relu": lambda v: jnp.maximum(v, 0.0),
    "gelu": jax.nn.gelu,
    "silu": jax.nn.silu,
    "tanh": jnp.tanh,
}


def _round_up(v, m):
    return -(-v // m) * m


def _round_down(v, m):
    return (v // m) * m


def _fused_kernel(x_ref, t_ref, w_ref, b_ref, o_ref, *, act, resid):
    # One MXU pass: concat [x | t] in VMEM (never materialized in HBM).
    xt = jnp.concatenate([x_ref[...], t_ref[...]], axis=-1)
    acc = jnp.dot(xt, w_ref[...], preferred_element_type=jnp.float32)
    acc = acc + b_ref[...].astype(jnp.float32)
    acc = _ACTS[act](acc)
    if resid:
        acc = acc + x_ref[...].astype(jnp.float32)
    o_ref[...] = acc.astype(o_ref.dtype)


def _split_kernel(x_ref, t_ref, wx_ref, wt_ref, b_ref, o_ref, *, act, resid):
    # Two MXU passes sharing one f32 accumulator (K > 128: fusing buys nothing).
    acc = jnp.dot(x_ref[...], wx_ref[...], preferred_element_type=jnp.float32)
    acc = acc + jnp.dot(t_ref[...], wt_ref[...], preferred_element_type=jnp.float32)
    acc = acc + b_ref[...].astype(jnp.float32)
    acc = _ACTS[act](acc)
    if resid:
        acc = acc + x_ref[...].astype(jnp.float32)
    o_ref[...] = acc.astype(o_ref.dtype)


def _pick_block_rows(B, in_dim, time_dim, out_dim, itemsize):
    """Row tile sized by VMEM/feature width instead of a fixed constant."""
    sub = 8 if itemsize >= 4 else 16
    # Activation bytes per row (x + t + out), double-buffered by the pipeline.
    row_bytes = 2 * (in_dim + time_dim + out_dim) * itemsize
    # Target ~4 MiB of double-buffered activation tiles per grid step.
    tb = max(sub, _round_down((4 * _MIB) // max(row_bytes, 1), sub))
    if B >= 2 * sub:
        # Guarantee >= 2 grid steps so both v7x TensorCores get work.
        tb = min(tb, _round_up(pl.cdiv(B, 2), sub))
    if tb >= B:
        return B  # single full-batch block (always layout-legal)
    return tb     # multiple of `sub`; ragged tail handled by Pallas


def best_block(x, t, weight, bias, *, act=None, resid=True, b_norm=False,
               block_rows=None, weight_is_kn=False, xla_fallback_elems=0):
    """Pallas implementation of BestBlock.forward.

    Args:
      x:      (..., in_dim) input features.
      t:      (..., time_dim) time embedding (same leading dims as x).
      weight: PyTorch nn.Linear weight (out_dim, in_dim + time_dim); or, if
              weight_is_kn=True, the pre-transposed (in_dim + time_dim, out_dim)
              layout so the transpose is hoisted out of the hot loop.
      bias:   (out_dim,).
      act:    None | "relu" | "gelu" | "silu" | "tanh".
      resid:  add residual (requires in_dim == out_dim).
      b_norm: must be False (BatchNorm fusion not implemented).
      block_rows: optional row-tile override (rounded to sublane multiple).
      xla_fallback_elems: if B * out_dim is below this threshold, skip Pallas
              and let XLA fuse it (tiny shapes are pure launch overhead).
    """
    if b_norm:
        # TODO(synk): BatchNorm1d (b_norm=True) needs cross-batch running
        # statistics; it is not fused into this kernel (module default False).
        raise NotImplementedError("b_norm=True is not supported by the Pallas BestBlock kernel")
    if act not in _ACTS:
        raise ValueError(f"Unsupported activation {act!r}; supported: "
                         f"{sorted(k for k in _ACTS if k)} or None")

    lead = x.shape[:-1]
    in_dim = x.shape[-1]
    time_dim = t.shape[-1]
    K = in_dim + time_dim

    if weight_is_kn:
        assert weight.shape[0] == K, weight.shape
        out_dim = weight.shape[1]
        w_kn = weight                      # already (K, out_dim)
    else:
        out_dim = weight.shape[0]
        assert weight.shape[1] == K, weight.shape
        w_kn = jnp.transpose(weight)       # (K, out_dim); hoist via weight_is_kn=True
    if resid and in_dim != out_dim:
        raise ValueError("Residual connections require in_dim == out_dim")

    x2 = x.reshape(-1, in_dim)
    t2 = t.reshape(-1, time_dim).astype(x.dtype)
    w_kn = w_kn.astype(x.dtype)
    b2 = bias.reshape(1, out_dim).astype(jnp.float32)
    B = x2.shape[0]
    assert t2.shape[0] == B, (x.shape, t.shape)

    if B * out_dim < xla_fallback_elems:
        # Tiny problem: let XLA fuse the whole thing.
        acc = (x2.astype(jnp.float32) @ w_kn[:in_dim].astype(jnp.float32)
               + t2.astype(jnp.float32) @ w_kn[in_dim:].astype(jnp.float32) + b2)
        acc = _ACTS[act](acc)
        if resid:
            acc = acc + x2.astype(jnp.float32)
        return acc.astype(x.dtype).reshape(lead + (out_dim,))

    itemsize = jnp.dtype(x.dtype).itemsize
    sub = 8 if itemsize >= 4 else 16
    if block_rows is not None:
        tb = max(sub, _round_down(min(block_rows, B), sub))
    else:
        tb = _pick_block_rows(B, in_dim, time_dim, out_dim, itemsize)
    if tb >= B:
        tb = B
    grid = (pl.cdiv(B, tb),)

    # VMEM budget: double-buffered activation tiles + resident (2-buffer) weights.
    w_itemsize = jnp.dtype(w_kn.dtype).itemsize
    tile_bytes = 2 * tb * (in_dim + time_dim + out_dim) * itemsize
    weight_bytes = 2 * (K * out_dim * w_itemsize + out_dim * 4)
    need = tile_bytes + weight_bytes + 2 * _MIB   # margin for concat temp / epilogue
    if need > 56 * _MIB:
        # TODO(synk): add N/K tiling (grid over out_dim / in_dim with an f32 VMEM
        # accumulator) for layers whose weights don't fit v7x's 64 MiB VMEM.
        raise NotImplementedError(
            f"BestBlock weights too large for the fully-resident kernel "
            f"(~{need // _MIB} MiB VMEM needed); N/K tiling not implemented")
    compiler_params = pltpu.CompilerParams(
        dimension_semantics=("parallel",),
        vmem_limit_bytes=int(need) if need > 12 * _MIB else None,
    )

    fuse = K <= 128  # single MXU pass against the stacked (K, out_dim) weight
    if fuse:
        kernel = functools.partial(_fused_kernel, act=act, resid=resid)
        in_specs = [
            pl.BlockSpec((tb, in_dim), lambda i: (i, 0)),        # x tile
            pl.BlockSpec((tb, time_dim), lambda i: (i, 0)),      # t tile
            pl.BlockSpec((K, out_dim), lambda i: (0, 0)),        # stacked W (resident)
            pl.BlockSpec((1, out_dim), lambda i: (0, 0)),        # bias (resident)
        ]
        operands = (x2, t2, w_kn, b2)
    else:
        kernel = functools.partial(_split_kernel, act=act, resid=resid)
        wx = w_kn[:in_dim]                 # (in_dim, out_dim)
        wt = w_kn[in_dim:]                 # (time_dim, out_dim)
        in_specs = [
            pl.BlockSpec((tb, in_dim), lambda i: (i, 0)),
            pl.BlockSpec((tb, time_dim), lambda i: (i, 0)),
            pl.BlockSpec((in_dim, out_dim), lambda i: (0, 0)),
            pl.BlockSpec((time_dim, out_dim), lambda i: (0, 0)),
            pl.BlockSpec((1, out_dim), lambda i: (0, 0)),
        ]
        operands = (x2, t2, wx, wt, b2)

    out2 = pl.pallas_call(
        kernel,
        out_shape=jax.ShapeDtypeStruct((B, out_dim), x.dtype),
        grid=grid,
        in_specs=in_specs,
        out_specs=pl.BlockSpec((tb, out_dim), lambda i: (i, 0)),
        compiler_params=compiler_params,
    )(*operands)

    # TODO(synk): for out_dim < 128 the output stores are lane-masked (vst.msk);
    # a lane-dense (tb//f, f*out_dim) output slab would further cut store cost.
    return out2.reshape(lead + (out_dim,))


if __name__ == "__main__":
    key = jax.random.PRNGKey(0)
    k1, k2, k3, k4, k5, k6, k7, k8 = jax.random.split(key, 8)

    # --- Test 1: small-K fused path (one MXU pass), f32, resid, no act, grid=2 ---
    B, in_dim, time_dim, out_dim = 64, 32, 8, 32
    x = jax.random.normal(k1, (B, in_dim), dtype=jnp.float32)
    t = jax.random.normal(k2, (B, time_dim), dtype=jnp.float32)
    w = jax.random.normal(k3, (out_dim, in_dim + time_dim), dtype=jnp.float32) * 0.1
    b = jax.random.normal(k4, (out_dim,), dtype=jnp.float32) * 0.1

    out = jax.block_until_ready(best_block(x, t, w, b, act=None, resid=True))
    ref = jnp.concatenate([x, t], axis=-1) @ w.T + b + x
    assert out.shape == (B, out_dim), out.shape
    assert out.dtype == x.dtype, out.dtype
    assert bool(jnp.allclose(out, ref, atol=1e-3, rtol=1e-3)), "fused-path mismatch vs reference"

    # --- Test 2: large-K split path, bf16 operands, relu, resid, multi-step grid ---
    B2, in2, td2, od2 = 64, 192, 64, 192
    x_b = jax.random.normal(k5, (B2, in2), dtype=jnp.float32).astype(jnp.bfloat16)
    t_b = jax.random.normal(k6, (B2, td2), dtype=jnp.float32).astype(jnp.bfloat16)
    w_b = (jax.random.normal(k7, (od2, in2 + td2), dtype=jnp.float32) * 0.05).astype(jnp.bfloat16)
    b_b = jax.random.normal(k8, (od2,), dtype=jnp.float32) * 0.1

    out_b = jax.block_until_ready(best_block(x_b, t_b, w_b, b_b, act="relu", resid=True))
    xf, tf, wf = x_b.astype(jnp.float32), t_b.astype(jnp.float32), w_b.astype(jnp.float32)
    ref_b = jnp.maximum(jnp.concatenate([xf, tf], axis=-1) @ wf.T + b_b, 0.0) + xf
    assert out_b.shape == (B2, od2), out_b.shape
    assert out_b.dtype == jnp.bfloat16, out_b.dtype
    max_err = float(jnp.max(jnp.abs(out_b.astype(jnp.float32) - ref_b)))
    assert max_err < 1e-1, f"split-path mismatch vs reference, max err {max_err}"

    print("KERNEL_OK")
</pallas_src>

<mosaic_0001>
module attributes {stable_mosaic.version = 11 : i64} {
  func.func @_fused_kernel(%arg0: i32, %arg1: memref<32x32xf32, #tpu.memory_space<vmem>>, %arg2: memref<32x8xf32, #tpu.memory_space<vmem>>, %arg3: memref<40x32xf32, #tpu.memory_space<vmem>>, %arg4: memref<1x32xf32, #tpu.memory_space<vmem>>, %arg5: memref<32x32xf32, #tpu.memory_space<vmem>>) attributes {dimension_semantics = [#tpu.dimension_semantics<parallel>], iteration_bounds = array<i64: 2>, scalar_prefetch = 0 : i64, scratch_operands = 0 : i64, tpu.core_type = #tpu.core_type<tc>, window_params = [{transform_indices = @transform_0, window_bounds = array<i64: 32, 32>}, {transform_indices = @transform_1, window_bounds = array<i64: 32, 8>}, {pipeline_mode = #tpu.pipeline_mode<synchronous>, transform_indices = @transform_2, window_bounds = array<i64: 40, 32>}, {pipeline_mode = #tpu.pipeline_mode<synchronous>, transform_indices = @transform_3, window_bounds = array<i64: 1, 32>}, {transform_indices = @transform_4, window_bounds = array<i64: 32, 32>}]} {
    %c0 = arith.constant 0 : index
    %c0_0 = arith.constant 0 : index
    %0 = vector.load %arg1[%c0, %c0_0] : memref<32x32xf32, #tpu.memory_space<vmem>>, vector<32x32xf32>
    %c0_1 = arith.constant 0 : index
    %c0_2 = arith.constant 0 : index
    %1 = vector.load %arg2[%c0_1, %c0_2] : memref<32x8xf32, #tpu.memory_space<vmem>>, vector<32x8xf32>
    %2 = tpu.concatenate %0, %1 in 1 : vector<32x32xf32>, vector<32x8xf32> -> vector<32x40xf32>
    %c0_3 = arith.constant 0 : index
    %c0_4 = arith.constant 0 : index
    %3 = vector.load %arg3[%c0_3, %c0_4] : memref<40x32xf32, #tpu.memory_space<vmem>>, vector<40x32xf32>
    %cst = arith.constant dense<0.000000e+00> : vector<32x32xf32>
    %4 = tpu.matmul %2, %3, %cst {dimension_numbers = #tpu.dot_dimension_numbers<[1], [0], [0], [1], [0, 0, 1, 1], [], []>} : vector<32x40xf32>, vector<40x32xf32>, vector<32x32xf32> -> vector<32x32xf32>
    %c0_5 = arith.constant 0 : index
    %c0_6 = arith.constant 0 : index
    %5 = vector.load %arg4[%c0_5, %c0_6] : memref<1x32xf32, #tpu.memory_space<vmem>>, vector<1x32xf32>
    %6 = vector.broadcast %5 : vector<1x32xf32> to vector<32x32xf32>
    %7 = arith.addf %4, %6 : vector<32x32xf32>
    %c0_7 = arith.constant 0 : index
    %c0_8 = arith.constant 0 : index
    %8 = vector.load %arg1[%c0_7, %c0_8] : memref<32x32xf32, #tpu.memory_space<vmem>>, vector<32x32xf32>
    %9 = arith.addf %7, %8 : vector<32x32xf32>
    %c0_9 = arith.constant 0 : index
    %c0_10 = arith.constant 0 : index
    %10 = vector.load %arg5[%c0_9, %c0_10] : memref<32x32xf32, #tpu.memory_space<vmem>>, vector<32x32xf32>
    tpu.vector_store %arg5[%c0_9, %c0_10], %9 {strides = array<i32>} : memref<32x32xf32, #tpu.memory_space<vmem>>, vector<32x32xf32>,
    return
  }
  func.func @transform_0(%arg0: i32) -> (i32, i32) {
    %c0_i32 = arith.constant 0 : i32
    %c0_i32_0 = arith.constant 0 : i32
    return %arg0, %c0_i32 : i32, i32
  }
  func.func @transform_1(%arg0: i32) -> (i32, i32) {
    %c0_i32 = arith.constant 0 : i32
    %c0_i32_0 = arith.constant 0 : i32
    return %arg0, %c0_i32 : i32, i32
  }
  func.func @transform_2(%arg0: i32) -> (i32, i32) {
    %c0_i32 = arith.constant 0 : i32
    %c0_i32_0 = arith.constant 0 : i32
    %c0_i32_1 = arith.constant 0 : i32
    return %c0_i32, %c0_i32_0 : i32, i32
  }
  func.func @transform_3(%arg0: i32) -> (i32, i32) {
    %c0_i32 = arith.constant 0 : i32
    %c0_i32_0 = arith.constant 0 : i32
    %c0_i32_1 = arith.constant 0 : i32
    return %c0_i32, %c0_i32_0 : i32, i32
  }
  func.func @transform_4(%arg0: i32) -> (i32, i32) {
    %c0_i32 = arith.constant 0 : i32
    %c0_i32_0 = arith.constant 0 : i32
    return %arg0, %c0_i32 : i32, i32
  }
}

</mosaic_0001>

<llo_original>
// kernel: tpu_custom_call.1
$region0: #{tpu_custom_call.1}
  #allocation0 [shape = 'u32[]', space=smem, size = 0x4, offset = 0x4, fixed_abs, tag = 'smem constant byte address 0x4 - core index']
  #allocation1 [shape = 'u32[72,128]{1,0:T(1,128)}', space=vmem, size = 0x9000, scoped, tag = 'internal scratch']
  %s0 = inlined_call_operand.vmem [shape: f32[64,32], index: 0, kind: input, shape index: {}]
  %s1 = inlined_call_operand.vmem [shape: f32[64,8], index: 1, kind: input, shape index: {}]
  %s2 = inlined_call_operand.vmem [shape: f32[40,32], index: 2, kind: input, shape index: {}]
  %s3 = inlined_call_operand.vmem [shape: f32[1,32], index: 3, kind: input, shape index: {}]
  %s4 = inlined_call_operand.vmem [shape: f32[64,32], index: 4, kind: output, shape index: {}]
  %s5 = sld [smem:[#allocation0]]
  $region49: #{tpu_custom_call.1} parent=0
    _
  %s7 = ssub.s32 1, %s5
  %s8 = scalar_select 0, %s7, %s5
  loop: start=0, step=1, limit=4
  $region2: #{tpu_custom_call.1} parent=0 // loop_pre_header
    _
  $region3: #{tpu_custom_call.1} parent=0 // loop_header
    %s10 = sphi 0, %s14
    %p11 = scmp.ge.s32.totalorder %s10, 4
    %s20 = sphi 0, %s22
    %s23 = sphi 0, %s20
    %s24 = sphi 0, %s23
    %s40 = sphi 0, %s24
    %s46 = sphi 0, %s48
    %s49 = sphi 0, %s46
    %s50 = sphi 0, %s49
    %s66 = sphi 0, %s50
    %s70 = sphi 0, %s70
    %s72 = sphi 0, %s70
    %s73 = sphi 0, %s72
    %s87 = sphi 0, %s73
    %s91 = sphi 0, %s91
    %s93 = sphi 0, %s91
    %s94 = sphi 0, %s93
    %s108 = sphi 0, %s94
    %s114 = sphi 0, %s116
    %s117 = sphi 0, %s114
    %s118 = sphi 0, %s117
    %s134 = sphi 0, %s118
  $region4: #{tpu_custom_call.1} parent=0 // loop_header_branch
    %13 = sbr.rel (%p11) target = $region8
  $region5: #{tpu_custom_call.1} parent=0 // loop_body
    %s15 = ssub.s32 %s10, 1
    %s16 = ssub.s32 %s10, 2
    %s17 = sadd.s32 %s10, 1
    %s18 = ssub.s32 %s10, %s17
    %p19 = scmp.eq.s32.totalorder %s18, 0
    %s21 = sadd.s32 %s20, 1
    %s22 = scalar_select %p19, %s20, %s21
    %p25 = pneg %p19
    %p26 = scmp.eq.s32.totalorder %s10, 1
    %p27 = por %p25, %p26
    %p28 = scmp.ne.s32.totalorder %s20, %s23
    %p29 = scmp.eq.s32.totalorder %s10, 0
    %p30 = por %p28, %p29
    %p31 = scmp.ne.s32.totalorder %s20, %s23
    %p32 = scmp.eq.s32.totalorder %s15, 1
    %p33 = por %p31, %p32
    %p34 = scmp.ne.s32.totalorder %s23, %s24
    %p35 = scmp.eq.s32.totalorder %s15, 0
    %p36 = por %p34, %p35
    %p37 = scmp.ne.s32.totalorder %s23, %s24
    %p38 = scmp.eq.s32.totalorder %s16, 1
    %p39 = por %p37, %p38
    %p41 = scmp.ne.s32.totalorder %s24, %s40
    %p42 = scmp.eq.s32.totalorder %s16, 0
    %p43 = por %p41, %p42
    %s44 = ssub.s32 %s10, %s17
    %p45 = scmp.eq.s32.totalorder %s44, 0
    %s47 = sadd.s32 %s46, 1
    %s48 = scalar_select %p45, %s46, %s47
    %p51 = pneg %p45
    %p52 = scmp.eq.s32.totalorder %s10, 1
    %p53 = por %p51, %p52
    %p54 = scmp.ne.s32.totalorder %s46, %s49
    %p55 = scmp.eq.s32.totalorder %s10, 0
    %p56 = por %p54, %p55
    %p57 = scmp.ne.s32.totalorder %s46, %s49
    %p58 = scmp.eq.s32.totalorder %s15, 1
    %p59 = por %p57, %p58
    %p60 = scmp.ne.s32.totalorder %s49, %s50
    %p61 = scmp.eq.s32.totalorder %s15, 0
    %p62 = por %p60, %p61
    %p63 = scmp.ne.s32.totalorder %s49, %s50
    %p64 = scmp.eq.s32.totalorder %s16, 1
    %p65 = por %p63, %p64
    %p67 = scmp.ne.s32.totalorder %s50, %s66
    %p68 = scmp.eq.s32.totalorder %s16, 0
    %p69 = por %p67, %p68
    %s71 = sadd.s32 %s70, 1
    %p74 = scmp.eq.s32.totalorder %s10, 1
    %p75 = scmp.ne.s32.totalorder %s70, %s72
    %p76 = scmp.eq.s32.totalorder %s10, 0
    %p77 = por %p75, %p76
    %p78 = scmp.ne.s32.totalorder %s70, %s72
    %p79 = scmp.eq.s32.totalorder %s15, 1
    %p80 = por %p78, %p79
    %p81 = scmp.ne.s32.totalorder %s72, %s73
    %p82 = scmp.eq.s32.totalorder %s15, 0
    %p83 = por %p81, %p82
    %p84 = scmp.ne.s32.totalorder %s72, %s73
    %p85 = scmp.eq.s32.totalorder %s16, 1
    %p86 = por %p84, %p85
    %p88 = scmp.ne.s32.totalorder %s73, %s87
    %p89 = scmp.eq.s32.totalorder %s16, 0
    %p90 = por %p88, %p89
    %s92 = sadd.s32 %s91, 1
    %p95 = scmp.eq.s32.totalorder %s10, 1
    %p96 = scmp.ne.s32.totalorder %s91, %s93
    %p97 = scmp.eq.s32.totalorder %s10, 0
    %p98 = por %p96, %p97
    %p99 = scmp.ne.s32.totalorder %s91, %s93
    %p100 = scmp.eq.s32.totalorder %s15, 1
    %p101 = por %p99, %p100
    %p102 = scmp.ne.s32.totalorder %s93, %s94
    %p103 = scmp.eq.s32.totalorder %s15, 0
    %p104 = por %p102, %p103
    %p105 = scmp.ne.s32.totalorder %s93, %s94
    %p106 = scmp.eq.s32.totalorder %s16, 1
    %p107 = por %p105, %p106
    %p109 = scmp.ne.s32.totalorder %s94, %s108
    %p110 = scmp.eq.s32.totalorder %s16, 0
    %p111 = por %p109, %p110
    %s112 = ssub.s32 %s10, %s17
    %p113 = scmp.eq.s32.totalorder %s112, 0
    %s115 = sadd.s32 %s114, 1
    %s116 = scalar_select %p113, %s114, %s115
    %p119 = pneg %p113
    %p120 = scmp.eq.s32.totalorder %s10, 1
    %p121 = por %p119, %p120
    %p122 = scmp.ne.s32.totalorder %s114, %s117
    %p123 = scmp.eq.s32.totalorder %s10, 0
    %p124 = por %p122, %p123
    %p125 = scmp.ne.s32.totalorder %s114, %s117
    %p126 = scmp.eq.s32.totalorder %s15, 1
    %p127 = por %p125, %p126
    %p128 = scmp.ne.s32.totalorder %s117, %s118
    %p129 = scmp.eq.s32.totalorder %s15, 0
    %p130 = por %p128, %p129
    %p131 = scmp.ne.s32.totalorder %s117, %s118
    %p132 = scmp.eq.s32.totalorder %s16, 1
    %p133 = por %p131, %p132
    %p135 = scmp.ne.s32.totalorder %s118, %s134
    %p136 = scmp.eq.s32.totalorder %s16, 0
    %p137 = por %p135, %p136
    %p138 = scmp.le.s32.totalorder 1, %s10
    %p139 = scmp.lt.s32.totalorder %s10, 3
    %p140 = pnand %p138, %p139
    %p141 = pneg %p140
    // Predicated region
    $region9: #{tpu_custom_call.1} parent=5 // pred_check
      _
    $region10: #{tpu_custom_call.1} parent=5 // pred_check_branch
      %143 = sbr.rel (%p140) target = $region12
    $region11: #{tpu_custom_call.1} parent=5 // pred_region
      %s144 = ssub.s32 %s10, 1
      // Predicated region
      $region13: #{tpu_custom_call.1} parent=11 // pred_check
        %p145 = pneg %p83
      $region14: #{tpu_custom_call.1} parent=11 // pred_check_branch
        %147 = sbr.rel (%p145) target = $region16
      $region15: #{tpu_custom_call.1} parent=11 // pred_region
        _
      $region16: #{tpu_custom_call.1} parent=11 // pred_fallthru
        _
      // Predicated region
      $region17: #{tpu_custom_call.1} parent=11 // pred_check
        %p148 = pneg %p104
      $region18: #{tpu_custom_call.1} parent=11 // pred_check_branch
        %150 = sbr.rel (%p148) target = $region20
      $region19: #{tpu_custom_call.1} parent=11 // pred_region
        _
      $region20: #{tpu_custom_call.1} parent=11 // pred_fallthru
        _
    $region12: #{tpu_custom_call.1} parent=5 // pred_fallthru
      _
    %p151 = scmp.lt.s32.totalorder %s10, 2
    // Predicated region
    $region21: #{tpu_custom_call.1} parent=5 // pred_check
      %p152 = pneg %p151
    $region22: #{tpu_custom_call.1} parent=5 // pred_check_branch
      %154 = sbr.rel (%p152) target = $region24
    $region23: #{tpu_custom_call.1} parent=5 // pred_region
      // Predicated region
      $region25: #{tpu_custom_call.1} parent=23 // pred_check
        %p155 = pneg %p30
      $region26: #{tpu_custom_call.1} parent=23 // pred_check_branch
        %157 = sbr.rel (%p155) target = $region28
      $region27: #{tpu_custom_call.1} parent=23 // pred_region
        %s158 = smul.u32 4, %s10
        %p159 = scmp.lt.s32.totalorder %s158, 7
        %s160 = scalar_select %p159, %s158, 7
        %s161 = smul.addr %s160, 8
        %s162 = scalar_lea.vmem %s0, %s161
        %s163 = smul.u32 4, %s10
      $region28: #{tpu_custom_call.1} parent=23 // pred_fallthru
        _
      // Predicated region
      $region29: #{tpu_custom_call.1} parent=23 // pred_check
        %p164 = pneg %p56
      $region30: #{tpu_custom_call.1} parent=23 // pred_check_branch
        %166 = sbr.rel (%p164) target = $region32
      $region31: #{tpu_custom_call.1} parent=23 // pred_region
        %s167 = smul.u32 4, %s10
        %p168 = scmp.lt.s32.totalorder %s167, 7
        %s169 = scalar_select %p168, %s167, 7
        %s170 = smul.addr %s169, 8
        %s171 = scalar_lea.vmem %s1, %s170
        %s172 = smul.u32 4, %s10
      $region32: #{tpu_custom_call.1} parent=23 // pred_fallthru
        _
    $region24: #{tpu_custom_call.1} parent=5 // pred_fallthru
      _
    %p173 = scmp.le.s32.totalorder 1, %s10
    %p174 = scmp.lt.s32.totalorder %s10, 3
    %p175 = pnand %p173, %p174
    %p176 = pneg %p175
    // Predicated region
    $region33: #{tpu_custom_call.1} parent=5 // pred_check
      _
    $region34: #{tpu_custom_call.1} parent=5 // pred_check_branch
      %178 = sbr.rel (%p175) target = $region36
    $region35: #{tpu_custom_call.1} parent=5 // pred_region
      %s179 = ssub.s32 %s10, 1
      %s180 = smul.u32 4, %s15
      %p181 = scmp.lt.s32.totalorder %s180, 7
      %s182 = scalar_select %p181, %s180, 7
      %s183 = smul.addr %s182, 8
      %s184 = scalar_lea.vmem %s0, %s183
      %p185 = pneg %p36
      %p186 = pneg %p33
      %s187 = smul.u32 4, %s15
      %p188 = scmp.lt.s32.totalorder %s187, 7
      %s189 = scalar_select %p188, %s187, 7
      %s190 = smul.addr %s189, 8
      %s191 = scalar_lea.vmem %s1, %s190
      %p192 = pneg %p62
      %p193 = pneg %p59
      %p194 = pneg %p83
      %p195 = pneg %p80
      %p196 = pneg %p104
      %p197 = pneg %p101
      %p198 = pneg %p130
      %p199 = pneg %p127
      %s200 = smul.u32 4, %s15
      %p201 = scmp.lt.s32.totalorder %s200, 7
      %s202 = scalar_select %p201, %s200, 7
      %s203 = smul.addr %s202, 8
      %s204 = scalar_lea.vmem %s4, %s203
      %s205 = smul.u32 4, %s15
      %p206 = scmp.lt.s32.totalorder %s205, 7
      %s207 = scalar_select %p206, %s205, 7
      %s208 = smul.addr %s207, 8
      %s209 = scalar_lea.vmem %s0, %s208
      %s210 = smul.u32 4, %s15
      %s211 = smul.u32 4, %s15
      %p212 = scmp.lt.s32.totalorder %s211, 7
      %s213 = scalar_select %p212, %s211, 7
      %s214 = smul.addr %s213, 8
      %s215 = scalar_lea.vmem %s1, %s214
      %s216 = smul.u32 4, %s15
      %s217 = smul.u32 4, %s15
      %p218 = scmp.lt.s32.totalorder %s217, 7
      %s219 = scalar_select %p218, %s217, 7
      %s220 = smul.addr %s219, 8
      %s221 = scalar_lea.vmem %s4, %s220
      %s222 = smul.u32 4, %s15
      %v223 = vld [vmem:[%s209] sm:$0xff]
      %v224 = vld [vmem:[%s209 + $0x8] sm:$0xff]
      %v225 = vld [vmem:[%s209 + $0x10] sm:$0xff]
      %v226 = vld [vmem:[%s209 + $0x18] sm:$0xff]
      %v227 = vld [vmem:[%s215] sm:$0xff]
      %v228 = vld [vmem:[%s215 + $0x8] sm:$0xff]
      %v229 = vld [vmem:[%s215 + $0x10] sm:$0xff]
      %v230 = vld [vmem:[%s215 + $0x18] sm:$0xff]
      %235 = vrot.lane.b32.xlu0 %v227, 32
      %v236 = vpop.permute.xlu0 %235
      %237 = vrot.lane.b32.xlu0 %v228, 32
      %v238 = vpop.permute.xlu0 %237
      %239 = vrot.lane.b32.xlu0 %v229, 32
      %v240 = vpop.permute.xlu0 %239
      %241 = vrot.lane.b32.xlu0 %v230, 32
      %v242 = vpop.permute.xlu0 %241
      %vm247 = vcmask 261120
      %v248 = vsel %vm247, %v223, %v236
      %v249 = vsel %vm247, %v224, %v238
      %v250 = vsel %vm247, %v225, %v240
      %v251 = vsel %vm247, %v226, %v242
      %v252 = vld [vmem:[%s2] sm:$0xff]
      %v253 = vld [vmem:[%s2 + $0x8] sm:$0xff]
      %v254 = vld [vmem:[%s2 + $0x10] sm:$0xff]
      %v255 = vld [vmem:[%s2 + $0x18] sm:$0xff]
      %v256 = vld [vmem:[%s2 + $0x20] sm:$0xff]
      %v257 = vld [vmem:[%s3] sm:$0x1]
      %v259 = vperm.slane %v257, 0
      %vm261 = vcmask 326656
      %v263 = vsel %vm261, %v248, 0
      %v266 = vsel %vm261, %v249, 0
      %v269 = vsel %vm261, %v250, 0
      %v272 = vsel %vm261, %v251, 0
      %274 = vmatpush.msra.mxu0 0.0
      %275 = vmatpush.msra.mxu0 0.0
      %276 = vmatpush.msra.mxu0 0.0
      %277 = vmatpush.msra.mxu0 0.0
      %278 = vmatpush.msra.mxu0 0.0
      %279 = vmatpush.msra.mxu0 0.0
      %280 = vmatpush.msra.mxu0 0.0
      %281 = vmatpush.msra.mxu0 0.0
      %282 = vmatpush.msra.mxu0 0.0
      %283 = vmatpush.msra.mxu0 0.0
      %284 = vmatpush.msra.mxu0 0.0
      %285 = vmatpush.msra.mxu0 %v256
      %286 = vmatpush.msra.mxu0 %v255
      %287 = vmatpush.msra.mxu0 %v254
      %288 = vmatpush.msra.mxu0 %v253
      %289 = vmatpush.msra.mxu0 %v252
      %290 = vmatmul.f32.gmra.mxu0 %v263
      %v291 = vpop.f32.mrf.mxu0
      %v292 = vadd.f32 %v259, %v291
      %293 = vmatmul.f32.gmra.mxu0 %v266
      %v294 = vpop.f32.mrf.mxu0
      %v295 = vadd.f32 %v259, %v294
      %296 = vmatmul.f32.gmra.mxu0 %v269
      %v297 = vpop.f32.mrf.mxu0
      %v298 = vadd.f32 %v259, %v297
      %299 = vmatmul.f32.gmra.mxu0 %v272
      %v300 = vpop.f32.mrf.mxu0
      %v301 = vadd.f32 %v259, %v300
      %302 = vdwg.mxu0
      %v303 = vadd.f32 %v292, %v223
      %v304 = vadd.f32 %v295, %v224
      %v305 = vadd.f32 %v298, %v225
      %v306 = vadd.f32 %v301, %v226
      %307 = vst.msk [vmem:[%s221] sm:$0xff] %vm247, %v303
      %308 = vst.msk [vmem:[%s221 + $0x8] sm:$0xff] %vm247, %v304
      %309 = vst.msk [vmem:[%s221 + $0x10] sm:$0xff] %vm247, %v305
      %310 = vst.msk [vmem:[%s221 + $0x18] sm:$0xff] %vm247, %v306
      %s311 = smul.u32 4, %s15
      %p312 = scmp.lt.s32.totalorder %s311, 7
      %s313 = scalar_select %p312, %s311, 7
      %s314 = smul.addr %s313, 8
      %s315 = scalar_lea.vmem %s4, %s314
      // Predicated region
      $region37: #{tpu_custom_call.1} parent=35 // pred_check
        %p316 = pneg %p127
      $region38: #{tpu_custom_call.1} parent=35 // pred_check_branch
        %318 = sbr.rel (%p316) target = $region40
      $region39: #{tpu_custom_call.1} parent=35 // pred_region
        %s319 = smul.u32 4, %s15
      $region40: #{tpu_custom_call.1} parent=35 // pred_fallthru
        _
    $region36: #{tpu_custom_call.1} parent=5 // pred_fallthru
      _
    %p320 = scmp.le.s32.totalorder 2, %s10
    // Predicated region
    $region41: #{tpu_custom_call.1} parent=5 // pred_check
      %p321 = pneg %p320
    $region42: #{tpu_custom_call.1} parent=5 // pred_check_branch
      %323 = sbr.rel (%p321) target = $region44
    $region43: #{tpu_custom_call.1} parent=5 // pred_region
      %s324 = ssub.s32 %s10, 2
      // Predicated region
      $region45: #{tpu_custom_call.1} parent=43 // pred_check
        %p325 = pneg %p133
      $region46: #{tpu_custom_call.1} parent=43 // pred_check_branch
        %327 = sbr.rel (%p325) target = $region48
      $region47: #{tpu_custom_call.1} parent=43 // pred_region
        %s328 = smul.u32 4, %s16
        %p329 = scmp.lt.s32.totalorder %s328, 7
        %s330 = scalar_select %p329, %s328, 7
        %s331 = smul.addr %s330, 8
        %s332 = scalar_lea.vmem %s4, %s331
      $region48: #{tpu_custom_call.1} parent=43 // pred_fallthru
        _
    $region44: #{tpu_custom_call.1} parent=5 // pred_fallthru
      _
  $region6: #{tpu_custom_call.1} parent=0 // loop_footer
    %s14 = sadd.s32 1, %s10
  $region7: #{tpu_custom_call.1} parent=0 // loop_footer_branch
    %9 = sbr.rel target = $region3
  $region8: #{tpu_custom_call.1} parent=0 // loop_exit
    _

</llo_original>
